<compile_context>
chip_gen: v6e
topology: v6e:2x2x1
jax: 0.10.0
libtpu: 0.0.40
codegen_flags: <defaults>
</compile_context>

<pallas_src>
import functools

import jax
import jax.numpy as jnp
from jax.experimental import pallas as pl
from jax.experimental.pallas import tpu as pltpu


def _disc_loss_kernel(lt_ref, yt_ref, lf_ref, yf_ref, out_ref, *, n_true, n_false):
    """Fused BCE-with-logits (mean) for both discriminator paths.

    lt_ref  : VMEM (1, n_true)  float32 -- logits for real samples
    yt_ref  : VMEM (1, cap_t)   float32 -- full smoothed-label buffer (true)
    lf_ref  : VMEM (1, n_false) float32 -- logits for generated samples
    yf_ref  : VMEM (1, cap_f)   float32 -- full smoothed-label buffer (false)
    out_ref : VMEM (2, 128)     float32 -- row 0: loss_true, row 1: loss_false

    n_true / n_false are static Python ints baked in at trace time.
    """

    def bce_mean(x_ref, y_ref, n):
        x = x_ref[...]                     # (1, n) f32
        y = y_ref[:, :n]                   # static slice of the label buffer
        # Numerically stable BCE-with-logits (PyTorch formulation).
        loss = jnp.maximum(x, 0.0) - x * y + jnp.log1p(jnp.exp(-jnp.abs(x)))
        s = jnp.sum(loss, axis=1, keepdims=True)        # (1, 1)
        return s * jnp.float32(1.0 / n)                 # static reciprocal

    out_ref[0:1, :] = jnp.broadcast_to(bce_mean(lt_ref, yt_ref, n_true), (1, 128))
    out_ref[1:2, :] = jnp.broadcast_to(bce_mean(lf_ref, yf_ref, n_false), (1, 128))


@jax.jit
def _disc_loss_fused(logits_true, labels_true_lane, logits_false, labels_false_lane):
    """Single fused Pallas call; only a metadata reshape of the logits on host."""
    lt = logits_true.astype(jnp.float32).reshape(1, -1)     # (1, n_true)
    lf = logits_false.astype(jnp.float32).reshape(1, -1)    # (1, n_false)
    n_t = lt.shape[1]          # static at trace time
    n_f = lf.shape[1]

    kernel = functools.partial(_disc_loss_kernel, n_true=n_t, n_false=n_f)

    out = pl.pallas_call(
        kernel,
        out_shape=jax.ShapeDtypeStruct((2, 128), jnp.float32),
        in_specs=[
            pl.BlockSpec(memory_space=pltpu.MemorySpace.VMEM),   # logits_true  (1, n_t)
            pl.BlockSpec(memory_space=pltpu.MemorySpace.VMEM),   # labels_true  (1, cap_t)
            pl.BlockSpec(memory_space=pltpu.MemorySpace.VMEM),   # logits_false (1, n_f)
            pl.BlockSpec(memory_space=pltpu.MemorySpace.VMEM),   # labels_false (1, cap_f)
        ],
        out_specs=pl.BlockSpec(memory_space=pltpu.MemorySpace.VMEM),
    )(lt, labels_true_lane, lf, labels_false_lane)

    return out[0, 0], out[1, 0]


class DiscriminatorLogitsLoss:
    """JAX/Pallas port of labml_nn.gan.original.DiscriminatorLogitsLoss."""

    def __init__(self, smoothing: float = 0.2, seed: int = 1234):
        self.smoothing = smoothing
        key = jax.random.PRNGKey(seed)
        k1, k2, self._grow_key = jax.random.split(key, 3)
        # register_buffer('labels_true', uniform(1 - smoothing, 1), shape (256, 1))
        self.labels_true = jax.random.uniform(
            k1, (256, 1), jnp.float32, minval=1.0 - smoothing, maxval=1.0)
        # register_buffer('labels_false', uniform(0, smoothing), shape (256, 1))
        self.labels_false = jax.random.uniform(
            k2, (256, 1), jnp.float32, minval=0.0, maxval=smoothing)
        self._refresh_lane_views()

    def _refresh_lane_views(self):
        # Lane-dense (1, cap) views computed ONCE per growth event (hoisted out
        # of the per-call path; the kernel consumes these directly).
        self._labels_true_lane = self.labels_true.reshape(1, -1)
        self._labels_false_lane = self.labels_false.reshape(1, -1)

    def _maybe_grow(self, n_true: int, n_false: int):
        # Mirrors the "re-register larger buffers" behaviour of forward().
        grew = False
        if n_true > self.labels_true.shape[0]:
            kt, self._grow_key = jax.random.split(self._grow_key)
            self.labels_true = jax.random.uniform(
                kt, (n_true, 1), jnp.float32,
                minval=1.0 - self.smoothing, maxval=1.0)
            grew = True
        if n_false > self.labels_false.shape[0]:
            kf, self._grow_key = jax.random.split(self._grow_key)
            self.labels_false = jax.random.uniform(
                kf, (n_false, 1), jnp.float32,
                minval=0.0, maxval=self.smoothing)
            grew = True
        if grew:
            self._refresh_lane_views()

    def __call__(self, logits_true, logits_false):
        n_true = logits_true.shape[0]
        n_false = logits_false.shape[0]
        self._maybe_grow(n_true, n_false)
        return _disc_loss_fused(logits_true, self._labels_true_lane,
                                logits_false, self._labels_false_lane)


def _reference(logits_true, labels_true, logits_false, labels_false):
    def bce(x, y):
        x = x.astype(jnp.float32).reshape(-1)
        y = y.astype(jnp.float32).reshape(-1)
        return jnp.mean(jnp.maximum(x, 0.0) - x * y + jnp.log1p(jnp.exp(-jnp.abs(x))))
    return bce(logits_true, labels_true), bce(logits_false, labels_false)


if __name__ == "__main__":
    key = jax.random.PRNGKey(0)
    k_true, k_false, k_true2, k_false2 = jax.random.split(key, 4)

    loss_mod = DiscriminatorLogitsLoss(smoothing=0.2)

    # Case 1: small batch, shape (N, 1) as in the original module.
    n = 8
    logits_true = jax.random.normal(k_true, (n, 1), jnp.float32)
    logits_false = jax.random.normal(k_false, (n, 1), jnp.float32)
    loss_t, loss_f = loss_mod(logits_true, logits_false)
    jax.block_until_ready((loss_t, loss_f))
    ref_t, ref_f = _reference(
        logits_true, loss_mod.labels_true[:n],
        logits_false, loss_mod.labels_false[:n])
    assert jnp.allclose(loss_t, ref_t, atol=1e-5, rtol=1e-5), (loss_t, ref_t)
    assert jnp.allclose(loss_f, ref_f, atol=1e-5, rtol=1e-5), (loss_f, ref_f)

    # Case 2: mismatched batch sizes, non-128-aligned (exercises Mosaic's
    # handling of non-tile-aligned full-array shapes).
    n2t, n2f = 5, 13
    logits_true2 = jax.random.normal(k_true2, (n2t, 1), jnp.float32)
    logits_false2 = jax.random.normal(k_false2, (n2f, 1), jnp.float32)
    loss_t2, loss_f2 = loss_mod(logits_true2, logits_false2)
    jax.block_until_ready((loss_t2, loss_f2))
    ref_t2, ref_f2 = _reference(
        logits_true2, loss_mod.labels_true[:n2t],
        logits_false2, loss_mod.labels_false[:n2f])
    assert jnp.allclose(loss_t2, ref_t2, atol=1e-5, rtol=1e-5), (loss_t2, ref_t2)
    assert jnp.allclose(loss_f2, ref_f2, atol=1e-5, rtol=1e-5), (loss_f2, ref_f2)

    print("KERNEL_OK")
</pallas_src>

<mosaic_0001>
module attributes {stable_mosaic.version = 11 : i64} {
  func.func @_disc_loss_kernel(%arg0: memref<1x8xf32, #tpu.memory_space<vmem>>, %arg1: memref<1x256xf32, #tpu.memory_space<vmem>>, %arg2: memref<1x8xf32, #tpu.memory_space<vmem>>, %arg3: memref<1x256xf32, #tpu.memory_space<vmem>>, %arg4: memref<2x128xf32, #tpu.memory_space<vmem>>) attributes {dimension_semantics = [], scalar_prefetch = 0 : i64, scratch_operands = 0 : i64, tpu.core_type = #tpu.core_type<tc>} {
    %c0 = arith.constant 0 : index
    %c0_0 = arith.constant 0 : index
    %0 = vector.load %arg0[%c0, %c0_0] : memref<1x8xf32, #tpu.memory_space<vmem>>, vector<1x8xf32>
    %c0_1 = arith.constant 0 : index
    %c0_2 = arith.constant 0 : index
    %1 = vector.load %arg1[%c0_1, %c0_2] : memref<1x256xf32, #tpu.memory_space<vmem>>, vector<1x8xf32>
    %cst = arith.constant 0.000000e+00 : f32
    %2 = vector.broadcast %cst : f32 to vector<1x8xf32>
    %3 = arith.maximumf %0, %2 : vector<1x8xf32>
    %4 = arith.mulf %0, %1 : vector<1x8xf32>
    %5 = arith.subf %3, %4 : vector<1x8xf32>
    %6 = math.absf %0 : vector<1x8xf32>
    %cst_3 = arith.constant 0.000000e+00 : f32
    %7 = vector.broadcast %cst_3 : f32 to vector<1x8xf32>
    %8 = arith.subf %7, %6 : vector<1x8xf32>
    %9 = math.exp %8 : vector<1x8xf32>
    %10 = math.log1p %9 : vector<1x8xf32>
    %11 = arith.addf %5, %10 : vector<1x8xf32>
    %cst_4 = arith.constant dense<0.000000e+00> : vector<1xf32>
    %12 = vector.multi_reduction <add>, %11, %cst_4 [1] : vector<1x8xf32> to vector<1xf32>
    %13 = vector.shape_cast %12 : vector<1xf32> to vector<1x1xf32>
    %cst_5 = arith.constant 1.250000e-01 : f32
    %14 = vector.broadcast %cst_5 : f32 to vector<1x1xf32>
    %15 = arith.mulf %13, %14 : vector<1x1xf32>
    %16 = vector.shape_cast %15 : vector<1x1xf32> to vector<1x1xf32>
    %17 = vector.broadcast %16 : vector<1x1xf32> to vector<1x128xf32>
    %c0_6 = arith.constant 0 : index
    %c0_7 = arith.constant 0 : index
    %18 = vector.load %arg4[%c0_6, %c0_7] : memref<2x128xf32, #tpu.memory_space<vmem>>, vector<1x128xf32>
    tpu.vector_store %arg4[%c0_6, %c0_7], %17 {strides = array<i32>} : memref<2x128xf32, #tpu.memory_space<vmem>>, vector<1x128xf32>,
    %c0_8 = arith.constant 0 : index
    %c0_9 = arith.constant 0 : index
    %19 = vector.load %arg2[%c0_8, %c0_9] : memref<1x8xf32, #tpu.memory_space<vmem>>, vector<1x8xf32>
    %c0_10 = arith.constant 0 : index
    %c0_11 = arith.constant 0 : index
    %20 = vector.load %arg3[%c0_10, %c0_11] : memref<1x256xf32, #tpu.memory_space<vmem>>, vector<1x8xf32>
    %cst_12 = arith.constant 0.000000e+00 : f32
    %21 = vector.broadcast %cst_12 : f32 to vector<1x8xf32>
    %22 = arith.maximumf %19, %21 : vector<1x8xf32>
    %23 = arith.mulf %19, %20 : vector<1x8xf32>
    %24 = arith.subf %22, %23 : vector<1x8xf32>
    %25 = math.absf %19 : vector<1x8xf32>
    %cst_13 = arith.constant 0.000000e+00 : f32
    %26 = vector.broadcast %cst_13 : f32 to vector<1x8xf32>
    %27 = arith.subf %26, %25 : vector<1x8xf32>
    %28 = math.exp %27 : vector<1x8xf32>
    %29 = math.log1p %28 : vector<1x8xf32>
    %30 = arith.addf %24, %29 : vector<1x8xf32>
    %cst_14 = arith.constant dense<0.000000e+00> : vector<1xf32>
    %31 = vector.multi_reduction <add>, %30, %cst_14 [1] : vector<1x8xf32> to vector<1xf32>
    %32 = vector.shape_cast %31 : vector<1xf32> to vector<1x1xf32>
    %cst_15 = arith.constant 1.250000e-01 : f32
    %33 = vector.broadcast %cst_15 : f32 to vector<1x1xf32>
    %34 = arith.mulf %32, %33 : vector<1x1xf32>
    %35 = vector.shape_cast %34 : vector<1x1xf32> to vector<1x1xf32>
    %36 = vector.broadcast %35 : vector<1x1xf32> to vector<1x128xf32>
    %c1 = arith.constant 1 : index
    %c0_16 = arith.constant 0 : index
    %37 = vector.load %arg4[%c1, %c0_16] : memref<2x128xf32, #tpu.memory_space<vmem>>, vector<1x128xf32>
    tpu.vector_store %arg4[%c1, %c0_16], %36 {strides = array<i32>} : memref<2x128xf32, #tpu.memory_space<vmem>>, vector<1x128xf32>,
    return
  }
}

</mosaic_0001>

<llo_original>
// kernel: _disc_loss_fused.1
$region0: #{_disc_loss_fused.1}
  #allocation0 [shape = 'u32[]', space=smem, size = 0x4, offset = 0x4, fixed_abs, tag = 'smem constant byte address 0x4 - core index']
  #allocation1 [shape = 'u32[144,128]{1,0:T(1,128)}', space=vmem, size = 0x12000, scoped, tag = 'internal scratch']
  %s0 = inlined_call_operand.vmem [shape: f32[1,8], index: 0, kind: input, shape index: {}]
  %s1 = inlined_call_operand.vmem [shape: f32[1,256], index: 1, kind: input, shape index: {}]
  %s2 = inlined_call_operand.vmem [shape: f32[1,8], index: 2, kind: input, shape index: {}]
  %s3 = inlined_call_operand.vmem [shape: f32[1,256], index: 3, kind: input, shape index: {}]
  %s4 = inlined_call_operand.vmem [shape: f32[2,128], index: 4, kind: output, shape index: {}]
  %s5 = sld [smem:[#allocation0]]
  $region26: #{_disc_loss_fused.1} parent=0
    _
  %s7 = ssub.s32 1, %s5
  %s8 = scalar_select 0, %s7, %s5
  // Predicated region
  $region2: #{_disc_loss_fused.1} parent=0 // pred_check
    _
  $region3: #{_disc_loss_fused.1} parent=0 // pred_check_branch
    %10 = sbr.rel (0) target = $region5
  $region4: #{_disc_loss_fused.1} parent=0 // pred_region
    _
  $region5: #{_disc_loss_fused.1} parent=0 // pred_fallthru
    _
  // Predicated region
  $region6: #{_disc_loss_fused.1} parent=0 // pred_check
    _
  $region7: #{_disc_loss_fused.1} parent=0 // pred_check_branch
    %12 = sbr.rel (0) target = $region9
  $region8: #{_disc_loss_fused.1} parent=0 // pred_region
    _
  $region9: #{_disc_loss_fused.1} parent=0 // pred_fallthru
    _
  // Predicated region
  $region10: #{_disc_loss_fused.1} parent=0 // pred_check
    _
  $region11: #{_disc_loss_fused.1} parent=0 // pred_check_branch
    %14 = sbr.rel (0) target = $region13
  $region12: #{_disc_loss_fused.1} parent=0 // pred_region
    _
  $region13: #{_disc_loss_fused.1} parent=0 // pred_fallthru
    _
  // Predicated region
  $region14: #{_disc_loss_fused.1} parent=0 // pred_check
    _
  $region15: #{_disc_loss_fused.1} parent=0 // pred_check_branch
    %16 = sbr.rel (0) target = $region17
  $region16: #{_disc_loss_fused.1} parent=0 // pred_region
    _
  $region17: #{_disc_loss_fused.1} parent=0 // pred_fallthru
    _
  %v17 = vld [vmem:[%s0] sm:$0x1]
  %v18 = vld [vmem:[%s1] sm:$0x1]
  %v19 = vmax.f32 %v17, 0.0
  %v20 = vmul.f32 %v17, %v18
  %v21 = vsub.f32 %v19, %v20
  %v22 = vand.u32 2147483647, %v17
  %v23 = vsub.f32 0.0, %v22
  %v24 = vmul.f32 %v23, 1.442695
  %v25 = vpow.pop %v24
  %v26 = vadd.f32 %v25, 1.0
  %v27 = vlog2.pop %v26
  %v28 = vmul.f32 %v27, 0.6931472
  %v29 = vmul.f32 -0.5, %v25
  %v30 = vadd.f32 %v29, 1.0
  %v31 = vmul.f32 %v30, %v25
  %v32 = vand.u32 2147483647, %v25
  %vm33 = vcmp.lt.f32.partialorder %v32, 0.0004427343
  %v34 = vsel %vm33, %v31, %v28
  %v35 = vadd.f32 %v21, %v34
  %vm36 = vcmask 57344
  %v37 = vsel %vm36, %v35, 0.0
  %38 = vadd.xlane.f32.xlu0 %v37
  %v39 = vpop.xlane.xlu0 %38
  %v40 = vmul.f32 %v39, 0.125
  %41 = vst [vmem:[%s4] sm:$0x1] %v40
  %v42 = vld [vmem:[%s2] sm:$0x1]
  %v43 = vld [vmem:[%s3] sm:$0x1]
  %v44 = vmax.f32 %v42, 0.0
  %v45 = vmul.f32 %v42, %v43
  %v46 = vsub.f32 %v44, %v45
  %v47 = vand.u32 2147483647, %v42
  %v48 = vsub.f32 0.0, %v47
  %v49 = vmul.f32 %v48, 1.442695
  %v50 = vpow.pop %v49
  %v51 = vadd.f32 %v50, 1.0
  %v52 = vlog2.pop %v51
  %v53 = vmul.f32 %v52, 0.6931472
  %v54 = vmul.f32 -0.5, %v50
  %v55 = vadd.f32 %v54, 1.0
  %v56 = vmul.f32 %v55, %v50
  %v57 = vand.u32 2147483647, %v50
  %vm58 = vcmp.lt.f32.partialorder %v57, 0.0004427343
  %v59 = vsel %vm58, %v56, %v53
  %v60 = vadd.f32 %v46, %v59
  %v61 = vsel %vm36, %v60, 0.0
  %62 = vadd.xlane.f32.xlu0 %v61
  %v63 = vpop.xlane.xlu0 %62
  %v64 = vmul.f32 %v63, 0.125
  %65 = vst [vmem:[%s4 + $0x1] sm:$0x1] %v64
  // Predicated region
  $region18: #{_disc_loss_fused.1} parent=0 // pred_check
    _
  $region19: #{_disc_loss_fused.1} parent=0 // pred_check_branch
    %67 = sbr.rel (0) target = $region21
  $region20: #{_disc_loss_fused.1} parent=0 // pred_region
    _
  $region21: #{_disc_loss_fused.1} parent=0 // pred_fallthru
    _
  // Predicated region
  $region22: #{_disc_loss_fused.1} parent=0 // pred_check
    _
  $region23: #{_disc_loss_fused.1} parent=0 // pred_check_branch
    %69 = sbr.rel (0) target = $region25
  $region24: #{_disc_loss_fused.1} parent=0 // pred_region
    _
  $region25: #{_disc_loss_fused.1} parent=0 // pred_fallthru
    _

</llo_original>
